<compile_context>
chip_gen: v5e
topology: v5e:2x2
jax: 0.10.0
libtpu: 0.0.40
codegen_flags: <defaults>
</compile_context>

<pallas_src>
import jax
import jax.numpy as jnp
from jax.experimental import pallas as pl
from jax.experimental.pallas import tpu as pltpu


def _round_up(x, m):
    return ((x + m - 1) // m) * m


def logreg_kernel(x_ref, w_ref, b_ref, o_ref):
    # x_ref: (tm, hid_dim) bf16, w_ref: (hid_dim, tn) bf16, b_ref: (1, tn) f32
    # MXU matmul with f32 accumulation, f32 bias add on the VPU, lane-dense
    # f32 store.
    acc = jnp.dot(x_ref[...], w_ref[...], preferred_element_type=jnp.float32)
    o_ref[...] = (acc + b_ref[...]).astype(o_ref.dtype)


def logreg_forward(x, w, b, *, tm_max=2048, compute_dtype=jnp.bfloat16):
    """nn.Linear forward: x (N, hid_dim), w (out_dim, hid_dim), b (out_dim,)."""
    n, hid_dim = x.shape
    out_dim = w.shape[0]
    acc_dtype = jnp.float32
    cbytes = jnp.dtype(compute_dtype).itemsize

    # Conservative VMEM working budget that is safe on v5e/v6e (128 MiB) and
    # v7x (64 MiB physical).
    vmem_budget = 40 * 1024 * 1024

    # ---- out-dim tiling: keep W fully resident when it fits comfortably,
    # otherwise stream (hid_dim x tn) lane-dense slabs double-buffered.
    out_p128 = _round_up(out_dim, 128)
    if hid_dim * out_p128 * cbytes <= vmem_budget // 2:
        tn = out_p128
    else:
        tn = 512
    out_p = _round_up(out_dim, tn)
    gn = out_p // tn
    w_resident = gn == 1

    # ---- batch tile: multiple of 8 sublanes, large (per-step overhead
    # ~0.35us), capped so (a) v7x megacore gets >= 2 parallel grid steps and
    # (b) the double-buffered x/out tiles fit the VMEM budget.
    n_eff = max(n, 8)                      # sublane floor for the block shape
    tm = min(tm_max, _round_up(n_eff, 8))
    if n_eff >= 16:
        tm = min(tm, _round_up(pl.cdiv(n_eff, 2), 8))

    def footprint(tm_):
        w_bufs = 1 if w_resident else 2
        return (w_bufs * hid_dim * tn * cbytes      # weight
                + w_bufs * tn * 4                   # bias
                + 2 * tm_ * hid_dim * cbytes        # x tile (double-buffered)
                + 2 * tm_ * tn * 4)                 # out tile (double-buffered)

    while tm > 8 and footprint(tm) > vmem_budget:
        tm = max(8, _round_up(tm // 2, 8))

    gm = pl.cdiv(n_eff, tm)

    # ---- one-time parameter prep (tiny): lane-dense pad of W's out dim and
    # bias, single wrapper-side transpose of W, cast streamed operands to the
    # compute dtype.  x itself is NOT padded (only a cast).
    x_c = x.astype(compute_dtype)
    if n_eff != n:  # only for degenerate n < 8
        x_c = jnp.pad(x_c, ((0, n_eff - n), (0, 0)))
    w_t = jnp.pad(w, ((0, out_p - out_dim), (0, 0))).T.astype(compute_dtype)
    b_p = jnp.pad(b, (0, out_p - out_dim)).astype(acc_dtype).reshape(1, out_p)

    cost = pl.CostEstimate(
        flops=2 * n * hid_dim * out_p,
        transcendentals=0,
        bytes_accessed=int(x_c.size * cbytes + w_t.size * cbytes
                           + b_p.size * 4 + n_eff * out_p * 4),
    )
    vmem_limit = int(min(56 * 1024 * 1024,
                         max(2 * footprint(tm), 16 * 1024 * 1024)))

    def build_call(single_buffer_consts):
        if single_buffer_consts:
            w_spec = pl.BlockSpec((hid_dim, tn), lambda i, j: (0, j),
                                  pipeline_mode=pl.Buffered(1))
            b_spec = pl.BlockSpec((1, tn), lambda i, j: (0, j),
                                  pipeline_mode=pl.Buffered(1))
        else:
            w_spec = pl.BlockSpec((hid_dim, tn), lambda i, j: (0, j))
            b_spec = pl.BlockSpec((1, tn), lambda i, j: (0, j))
        return pl.pallas_call(
            logreg_kernel,
            out_shape=jax.ShapeDtypeStruct((n_eff, out_p), acc_dtype),
            grid_spec=pltpu.PrefetchScalarGridSpec(
                num_scalar_prefetch=0,
                grid=(gm, gn),
                in_specs=[
                    pl.BlockSpec((tm, hid_dim), lambda i, j: (i, 0)),  # x
                    w_spec,                                            # W^T
                    b_spec,                                            # bias
                ],
                out_specs=pl.BlockSpec((tm, tn), lambda i, j: (i, j)),
            ),
            compiler_params=pltpu.CompilerParams(
                dimension_semantics=("parallel", "parallel"),
                vmem_limit_bytes=vmem_limit,
            ),
            cost_estimate=cost,
        )

    try:
        out_padded = build_call(w_resident)(x_c, w_t, b_p)
    except Exception:
        # Compatibility fallback for jax versions that reject Buffered(1) on
        # grid-invariant operands; identical semantics, default buffering.
        out_padded = build_call(False)(x_c, w_t, b_p)

    return out_padded[:n, :out_dim]


if __name__ == "__main__":
    # Small shapes consistent with LogReg(hid_dim, out_dim) on a 2-D input.
    batch, hid_dim, out_dim = 16, 32, 8

    key = jax.random.PRNGKey(0)
    kx, kw, kb = jax.random.split(key, 3)

    # Deterministic parameter init (mimics nn.Linear's uniform fan-in init).
    bound = 1.0 / (hid_dim ** 0.5)
    x = jax.random.normal(kx, (batch, hid_dim), dtype=jnp.float32)
    w = jax.random.uniform(kw, (out_dim, hid_dim), dtype=jnp.float32,
                           minval=-bound, maxval=bound)
    b = jax.random.uniform(kb, (out_dim,), dtype=jnp.float32,
                           minval=-bound, maxval=bound)

    y = logreg_forward(x, w, b)
    jax.block_until_ready(y)

    # Reference nn.Linear semantics (f32).  The kernel streams x/W in bf16
    # with f32 accumulation, so the tolerance is relaxed vs. pure f32.
    y_ref = x @ w.T + b
    assert y.shape == (batch, out_dim)
    assert jnp.allclose(y, y_ref, atol=2e-2, rtol=2e-2), \
        float(jnp.max(jnp.abs(y - y_ref)))

    print("KERNEL_OK")
</pallas_src>

<mosaic_0001>
module attributes {stable_mosaic.version = 11 : i64} {
  func.func @logreg_kernel(%arg0: i32, %arg1: i32, %arg2: memref<8x32xbf16, #tpu.memory_space<vmem>>, %arg3: memref<32x128xbf16, #tpu.memory_space<vmem>>, %arg4: memref<1x128xf32, #tpu.memory_space<vmem>>, %arg5: memref<8x128xf32, #tpu.memory_space<vmem>>) attributes {dimension_semantics = [#tpu.dimension_semantics<parallel>, #tpu.dimension_semantics<parallel>], iteration_bounds = array<i64: 2, 1>, scalar_prefetch = 0 : i64, scratch_operands = 0 : i64, tpu.core_type = #tpu.core_type<tc>, window_params = [{transform_indices = @transform_0, window_bounds = array<i64: 8, 32>}, {pipeline_mode = #tpu.pipeline_mode<synchronous>, transform_indices = @transform_1, window_bounds = array<i64: 32, 128>}, {pipeline_mode = #tpu.pipeline_mode<synchronous>, transform_indices = @transform_2, window_bounds = array<i64: 1, 128>}, {transform_indices = @transform_3, window_bounds = array<i64: 8, 128>}]} {
    %c0 = arith.constant 0 : index
    %c0_0 = arith.constant 0 : index
    %0 = vector.load %arg2[%c0, %c0_0] : memref<8x32xbf16, #tpu.memory_space<vmem>>, vector<8x32xbf16>
    %c0_1 = arith.constant 0 : index
    %c0_2 = arith.constant 0 : index
    %1 = vector.load %arg3[%c0_1, %c0_2] : memref<32x128xbf16, #tpu.memory_space<vmem>>, vector<32x128xbf16>
    %cst = arith.constant dense<0.000000e+00> : vector<8x128xf32>
    %2 = tpu.matmul %0, %1, %cst {dimension_numbers = #tpu.dot_dimension_numbers<[1], [0], [0], [1], [0, 0, 1, 1], [], []>} : vector<8x32xbf16>, vector<32x128xbf16>, vector<8x128xf32> -> vector<8x128xf32>
    %c0_3 = arith.constant 0 : index
    %c0_4 = arith.constant 0 : index
    %3 = vector.load %arg4[%c0_3, %c0_4] : memref<1x128xf32, #tpu.memory_space<vmem>>, vector<1x128xf32>
    %4 = vector.broadcast %3 : vector<1x128xf32> to vector<8x128xf32>
    %5 = arith.addf %2, %4 : vector<8x128xf32>
    %c0_5 = arith.constant 0 : index
    %c0_6 = arith.constant 0 : index
    %6 = vector.load %arg5[%c0_5, %c0_6] : memref<8x128xf32, #tpu.memory_space<vmem>>, vector<8x128xf32>
    tpu.vector_store %arg5[%c0_5, %c0_6], %5 {strides = array<i32>} : memref<8x128xf32, #tpu.memory_space<vmem>>, vector<8x128xf32>,
    return
  }
  func.func @transform_0(%arg0: i32, %arg1: i32) -> (i32, i32) {
    %c0_i32 = arith.constant 0 : i32
    %c0_i32_0 = arith.constant 0 : i32
    return %arg0, %c0_i32 : i32, i32
  }
  func.func @transform_1(%arg0: i32, %arg1: i32) -> (i32, i32) {
    %c0_i32 = arith.constant 0 : i32
    %c0_i32_0 = arith.constant 0 : i32
    return %c0_i32, %arg1 : i32, i32
  }
  func.func @transform_2(%arg0: i32, %arg1: i32) -> (i32, i32) {
    %c0_i32 = arith.constant 0 : i32
    %c0_i32_0 = arith.constant 0 : i32
    return %c0_i32, %arg1 : i32, i32
  }
  func.func @transform_3(%arg0: i32, %arg1: i32) -> (i32, i32) {
    %c0_i32 = arith.constant 0 : i32
    return %arg0, %arg1 : i32, i32
  }
}

module attributes {stable_mosaic.version = 11 : i64} {
  func.func @logreg_kernel(%arg0: i32, %arg1: i32, %arg2: memref<8x32xbf16, #tpu.memory_space<vmem>>, %arg3: memref<32x128xbf16, #tpu.memory_space<vmem>>, %arg4: memref<1x128xf32, #tpu.memory_space<vmem>>, %arg5: memref<8x128xf32, #tpu.memory_space<vmem>>) attributes {dimension_semantics = [#tpu.dimension_semantics<parallel>, #tpu.dimension_semantics<parallel>], iteration_bounds = array<i64: 2, 1>, scalar_prefetch = 0 : i64, scratch_operands = 0 : i64, tpu.core_type = #tpu.core_type<tc>, window_params = [{transform_indices = @transform_0, window_bounds = array<i64: 8, 32>}, {transform_indices = @transform_1, window_bounds = array<i64: 32, 128>}, {transform_indices = @transform_2, window_bounds = array<i64: 1, 128>}, {transform_indices = @transform_3, window_bounds = array<i64: 8, 128>}]} {
    %c0 = arith.constant 0 : index
    %c0_0 = arith.constant 0 : index
    %0 = vector.load %arg2[%c0, %c0_0] : memref<8x32xbf16, #tpu.memory_space<vmem>>, vector<8x32xbf16>
    %c0_1 = arith.constant 0 : index
    %c0_2 = arith.constant 0 : index
    %1 = vector.load %arg3[%c0_1, %c0_2] : memref<32x128xbf16, #tpu.memory_space<vmem>>, vector<32x128xbf16>
    %cst = arith.constant dense<0.000000e+00> : vector<8x128xf32>
    %2 = tpu.matmul %0, %1, %cst {dimension_numbers = #tpu.dot_dimension_numbers<[1], [0], [0], [1], [0, 0, 1, 1], [], []>} : vector<8x32xbf16>, vector<32x128xbf16>, vector<8x128xf32> -> vector<8x128xf32>
    %c0_3 = arith.constant 0 : index
    %c0_4 = arith.constant 0 : index
    %3 = vector.load %arg4[%c0_3, %c0_4] : memref<1x128xf32, #tpu.memory_space<vmem>>, vector<1x128xf32>
    %4 = vector.broadcast %3 : vector<1x128xf32> to vector<8x128xf32>
    %5 = arith.addf %2, %4 : vector<8x128xf32>
    %c0_5 = arith.constant 0 : index
    %c0_6 = arith.constant 0 : index
    %6 = vector.load %arg5[%c0_5, %c0_6] : memref<8x128xf32, #tpu.memory_space<vmem>>, vector<8x128xf32>
    tpu.vector_store %arg5[%c0_5, %c0_6], %5 {strides = array<i32>} : memref<8x128xf32, #tpu.memory_space<vmem>>, vector<8x128xf32>,
    return
  }
  func.func @transform_0(%arg0: i32, %arg1: i32) -> (i32, i32) {
    %c0_i32 = arith.constant 0 : i32
    %c0_i32_0 = arith.constant 0 : i32
    return %arg0, %c0_i32 : i32, i32
  }
  func.func @transform_1(%arg0: i32, %arg1: i32) -> (i32, i32) {
    %c0_i32 = arith.constant 0 : i32
    %c0_i32_0 = arith.constant 0 : i32
    return %c0_i32, %arg1 : i32, i32
  }
  func.func @transform_2(%arg0: i32, %arg1: i32) -> (i32, i32) {
    %c0_i32 = arith.constant 0 : i32
    %c0_i32_0 = arith.constant 0 : i32
    return %c0_i32, %arg1 : i32, i32
  }
  func.func @transform_3(%arg0: i32, %arg1: i32) -> (i32, i32) {
    %c0_i32 = arith.constant 0 : i32
    return %arg0, %arg1 : i32, i32
  }
}

</mosaic_0001>

<llo_original>
// kernel: tpu_custom_call.1
$region0: #{tpu_custom_call.1}
  #allocation0 [shape = 'u32[]', space=smem, size = 0x4, offset = 0x4, fixed_abs, tag = 'smem constant byte address 0x4 - core index']
  #allocation1 [shape = 'u32[72,128]{1,0:T(1,128)}', space=vmem, size = 0x9000, scoped, tag = 'internal scratch']
  %s0 = inlined_call_operand.hbm [shape: bf16[16,32], index: 0, kind: input, shape index: {}]
  %s1 = inlined_call_operand.hbm [shape: bf16[32,128], index: 1, kind: input, shape index: {}]
  %s2 = inlined_call_operand.vmem [shape: f32[1,128], index: 2, kind: input, shape index: {}]
  %s3 = inlined_call_operand.hbm [shape: f32[16,128], index: 3, kind: output, shape index: {}]
  %s4 = sld [smem:[#allocation0]]
  $region53: #{tpu_custom_call.1} parent=0
    _
  %s6 = ssub.s32 1, %s4
  %s7 = scalar_select 0, %s6, %s4
  $region1: #{tpu_custom_call.1} parent=0
    #allocation2 [shape = 'u8[4096]{0}', space=vmem, size = 0x1000, scoped, tag = 'input window, operand 0']
    #allocation3 [shape = 's32[2]{0}', space=sflag, size = 0x8, scoped, tag = 'scoped memory for tpu_custom_call.1']
    #allocation4 [shape = 's32[2]{0}', space=sflag, size = 0x8, scoped, tag = 'scoped memory for tpu_custom_call.1']
    #allocation5 [shape = 'u8[8192]{0}', space=vmem, size = 0x2000, scoped, tag = 'input window, operand 1, single buffered']
    #allocation6 [shape = 's32[1]{0}', space=sflag, size = 0x4, scoped, tag = 'scoped memory for tpu_custom_call.1']
    #allocation7 [shape = 'u8[8192]{0}', space=vmem, size = 0x2000, scoped, tag = 'output window, operand 0']
    %8 = vsyncpa [#allocation3], 0
    %s9 = scalar_lea.sflag [#allocation3], 1
    %10 = vsyncpa %s9, 0
    %11 = vsyncpa [#allocation6], 0
    %12 = vsyncpa [#allocation4], 0
    %s13 = scalar_lea.sflag [#allocation4], 1
    %14 = vsyncpa %s13, 0
    loop: start=0, step=1, limit=4
    $region2: #{tpu_custom_call.1} parent=1 // loop_pre_header
      _
    $region3: #{tpu_custom_call.1} parent=1 // loop_header
      %s16 = sphi 0, %s20
      %p17 = scmp.ge.s32.totalorder %s16, 4
      %s23 = sphi 0, %s35
      %s24 = sphi 0, %s31
      %s25 = sphi 0, %s23
      %s26 = sphi 0, %s24
      %s27 = sphi 0, %s25
      %s28 = sphi 0, %s26
      %s38 = sphi 0, %s40
      %s41 = sphi 0, %s38
      %s42 = sphi 0, %s41
      %s58 = sphi 0, %s42
      %s64 = sphi 0, %s66
      %s67 = sphi 0, %s64
      %s68 = sphi 0, %s67
      %s84 = sphi 0, %s68
      %s90 = sphi 0, %s92
      %s93 = sphi 0, %s90
      %s94 = sphi 0, %s93
      %s110 = sphi 0, %s94
      %s118 = sphi 0, %s120
      %s121 = sphi 0, %s118
      %s122 = sphi 0, %s121
      %s138 = sphi 0, %s122
    $region4: #{tpu_custom_call.1} parent=1 // loop_header_branch
      %19 = sbr.rel (%p17) target = $region8
    $region5: #{tpu_custom_call.1} parent=1 // loop_body
      %s21 = ssub.s32 %s16, 1
      %s22 = ssub.s32 %s16, 2
      %s29 = sadd.s32 1, %s24
      %p30 = scmp.ge.s32.totalorder %s29, 1
      %s31 = scalar_select %p30, 0, %s29
      %s32 = sadd.s32 1, %s23
      %s33 = scalar_select %p30, %s32, %s23
      %p34 = scmp.ge.s32.totalorder %s33, 2
      %s35 = scalar_select %p34, 0, %s33
      %s36 = ssub.s32 %s23, %s35
      %p37 = scmp.eq.s32.totalorder %s36, 0
      %s39 = sadd.s32 %s38, 1
      %s40 = scalar_select %p37, %s38, %s39
      %p43 = pneg %p37
      %p44 = scmp.eq.s32.totalorder %s16, 1
      %p45 = por %p43, %p44
      %p46 = scmp.ne.s32.totalorder %s38, %s41
      %p47 = scmp.eq.s32.totalorder %s16, 0
      %p48 = por %p46, %p47
      %p49 = scmp.ne.s32.totalorder %s38, %s41
      %p50 = scmp.eq.s32.totalorder %s21, 1
      %p51 = por %p49, %p50
      %p52 = scmp.ne.s32.totalorder %s41, %s42
      %p53 = scmp.eq.s32.totalorder %s21, 0
      %p54 = por %p52, %p53
      %p55 = scmp.ne.s32.totalorder %s41, %s42
      %p56 = scmp.eq.s32.totalorder %s22, 1
      %p57 = por %p55, %p56
      %p59 = scmp.ne.s32.totalorder %s42, %s58
      %p60 = scmp.eq.s32.totalorder %s22, 0
      %p61 = por %p59, %p60
      %s62 = ssub.s32 %s24, %s31
      %p63 = scmp.eq.s32.totalorder %s62, 0
      %s65 = sadd.s32 %s64, 1
      %s66 = scalar_select %p63, %s64, %s65
      %p69 = pneg %p63
      %p70 = scmp.eq.s32.totalorder %s16, 1
      %p71 = por %p69, %p70
      %p72 = scmp.ne.s32.totalorder %s64, %s67
      %p73 = scmp.eq.s32.totalorder %s16, 0
      %p74 = por %p72, %p73
      %p75 = scmp.ne.s32.totalorder %s64, %s67
      %p76 = scmp.eq.s32.totalorder %s21, 1
      %p77 = por %p75, %p76
      %p78 = scmp.ne.s32.totalorder %s67, %s68
      %p79 = scmp.eq.s32.totalorder %s21, 0
      %p80 = por %p78, %p79
      %p81 = scmp.ne.s32.totalorder %s67, %s68
      %p82 = scmp.eq.s32.totalorder %s22, 1
      %p83 = por %p81, %p82
      %p85 = scmp.ne.s32.totalorder %s68, %s84
      %p86 = scmp.eq.s32.totalorder %s22, 0
      %p87 = por %p85, %p86
      %s88 = ssub.s32 %s24, %s31
      %p89 = scmp.eq.s32.totalorder %s88, 0
      %s91 = sadd.s32 %s90, 1
      %s92 = scalar_select %p89, %s90, %s91
      %p95 = pneg %p89
      %p96 = scmp.eq.s32.totalorder %s16, 1
      %p97 = por %p95, %p96
      %p98 = scmp.ne.s32.totalorder %s90, %s93
      %p99 = scmp.eq.s32.totalorder %s16, 0
      %p100 = por %p98, %p99
      %p101 = scmp.ne.s32.totalorder %s90, %s93
      %p102 = scmp.eq.s32.totalorder %s21, 1
      %p103 = por %p101, %p102
      %p104 = scmp.ne.s32.totalorder %s93, %s94
      %p105 = scmp.eq.s32.totalorder %s21, 0
      %p106 = por %p104, %p105
      %p107 = scmp.ne.s32.totalorder %s93, %s94
      %p108 = scmp.eq.s32.totalorder %s22, 1
      %p109 = por %p107, %p108
      %p111 = scmp.ne.s32.totalorder %s94, %s110
      %p112 = scmp.eq.s32.totalorder %s22, 0
      %p113 = por %p111, %p112
      %s114 = ssub.s32 %s23, %s35
      %s115 = ssub.s32 %s24, %s31
      %s116 = sor.u32 %s114, %s115
      %p117 = scmp.eq.s32.totalorder %s116, 0
      %s119 = sadd.s32 %s118, 1
      %s120 = scalar_select %p117, %s118, %s119
      %p123 = pneg %p117
      %p124 = scmp.eq.s32.totalorder %s16, 1
      %p125 = por %p123, %p124
      %p126 = scmp.ne.s32.totalorder %s118, %s121
      %p127 = scmp.eq.s32.totalorder %s16, 0
      %p128 = por %p126, %p127
      %p129 = scmp.ne.s32.totalorder %s118, %s121
      %p130 = scmp.eq.s32.totalorder %s21, 1
      %p131 = por %p129, %p130
      %p132 = scmp.ne.s32.totalorder %s121, %s122
      %p133 = scmp.eq.s32.totalorder %s21, 0
      %p134 = por %p132, %p133
      %p135 = scmp.ne.s32.totalorder %s121, %s122
      %p136 = scmp.eq.s32.totalorder %s22, 1
      %p137 = por %p135, %p136
      %p139 = scmp.ne.s32.totalorder %s122, %s138
      %p140 = scmp.eq.s32.totalorder %s22, 0
      %p141 = por %p139, %p140
      %p142 = scmp.le.s32.totalorder 1, %s16
      %p143 = scmp.lt.s32.totalorder %s16, 3
      %p144 = pnand %p142, %p143
      %p145 = pneg %p144
      // Predicated region
      $region9: #{tpu_custom_call.1} parent=5 // pred_check
        _
      $region10: #{tpu_custom_call.1} parent=5 // pred_check_branch
        %147 = sbr.rel (%p144) target = $region12
      $region11: #{tpu_custom_call.1} parent=5 // pred_region
        %s148 = ssub.s32 %s16, 1
        // Predicated region
        $region13: #{tpu_custom_call.1} parent=11 // pred_check
          %p149 = pneg %p80
        $region14: #{tpu_custom_call.1} parent=11 // pred_check_branch
          %151 = sbr.rel (%p149) target = $region16
        $region15: #{tpu_custom_call.1} parent=11 // pred_region
          %153 = vsyncadd [#allocation6], 0
          %s154 = smul.addr %s26, 4
          %s155 = scalar_lea.hbm %s1, %s154
          %s156 = sshll.u32 %s155, 4
          %s157 = int_to_ptr.hbm [resolvable:$true] %s156
          %s158 = sshll.u32 [#allocation5], 4
          %s159 = int_to_ptr.vmem [resolvable:$true] %s158
          %164 = dma.hbm_to_vmem [thread:$0]  %s157, 256, %s159, [#allocation6], 64, 64, 4
        $region16: #{tpu_custom_call.1} parent=11 // pred_fallthru
          _
        // Predicated region
        $region17: #{tpu_custom_call.1} parent=11 // pred_check
          %p165 = pneg %p106
        $region18: #{tpu_custom_call.1} parent=11 // pred_check_branch
          %167 = sbr.rel (%p165) target = $region20
        $region19: #{tpu_custom_call.1} parent=11 // pred_region
          %p168 = scmp.lt.s32.totalorder %s26, 0
          %s169 = scalar_select %p168, %s26, 0
          %s170 = scalar_lea.vmem %s2, %s169
        $region20: #{tpu_custom_call.1} parent=11 // pred_fallthru
          _
      $region12: #{tpu_custom_call.1} parent=5 // pred_fallthru
        _
      %p171 = scmp.lt.s32.totalorder %s16, 2
      // Predicated region
      $region21: #{tpu_custom_call.1} parent=5 // pred_check
        %p172 = pneg %p171
      $region22: #{tpu_custom_call.1} parent=5 // pred_check_branch
        %174 = sbr.rel (%p172) target = $region24
      $region23: #{tpu_custom_call.1} parent=5 // pred_region
        // Predicated region
        $region25: #{tpu_custom_call.1} parent=23 // pred_check
          %p175 = pneg %p48
        $region26: #{tpu_custom_call.1} parent=23 // pred_check_branch
          %177 = sbr.rel (%p175) target = $region28
        $region27: #{tpu_custom_call.1} parent=23 // pred_region
          %s178 = sand.u32 %s38, 1
          %s179 = scalar_lea.sflag [#allocation3], %s178
          %s180 = sand.u32 %s38, 1
          %s181 = smul.addr %s180, 4
          %s182 = scalar_lea.vmem [#allocation2], %s181
          %184 = vsyncadd %s179, 0
          %s185 = smul.addr %s23, 4
          %s186 = scalar_lea.hbm %s0, %s185
          %s188 = sshll.u32 %s186, 4
          %s189 = int_to_ptr.hbm [resolvable:$true] %s188
          %s190 = sshll.u32 %s182, 4
          %s191 = int_to_ptr.vmem [resolvable:$true] %s190
          %193 = dma.hbm_to_vmem [thread:$0]  %s189, 64, %s191, %s179
        $region28: #{tpu_custom_call.1} parent=23 // pred_fallthru
          _
      $region24: #{tpu_custom_call.1} parent=5 // pred_fallthru
        _
      %p194 = scmp.le.s32.totalorder 1, %s16
      %p195 = scmp.lt.s32.totalorder %s16, 3
      %p196 = pnand %p194, %p195
      %p197 = pneg %p196
      // Predicated region
      $region29: #{tpu_custom_call.1} parent=5 // pred_check
        _
      $region30: #{tpu_custom_call.1} parent=5 // pred_check_branch
        %199 = sbr.rel (%p196) target = $region32
      $region31: #{tpu_custom_call.1} parent=5 // pred_region
        %s200 = ssub.s32 %s16, 1
        %s201 = sand.u32 %s41, 1
        %s202 = scalar_lea.sflag [#allocation3], %s201
        %s203 = sand.u32 %s41, 1
        %s204 = smul.addr %s203, 4
        %s205 = scalar_lea.vmem [#allocation2], %s204
        // Predicated region
        $region33: #{tpu_custom_call.1} parent=31 // pred_check
          %p206 = pneg %p54
        $region34: #{tpu_custom_call.1} parent=31 // pred_check_branch
          %208 = sbr.rel (%p206) target = $region36
        $region35: #{tpu_custom_call.1} parent=31 // pred_region
          %210 = dma.done %s202, 64
        $region36: #{tpu_custom_call.1} parent=31 // pred_fallthru
          _
        // Predicated region
        $region37: #{tpu_custom_call.1} parent=31 // pred_check
          %p211 = pneg %p80
        $region38: #{tpu_custom_call.1} parent=31 // pred_check_branch
          %213 = sbr.rel (%p211) target = $region40
        $region39: #{tpu_custom_call.1} parent=31 // pred_region
          %215 = dma.done [#allocation6], 256
        $region40: #{tpu_custom_call.1} parent=31 // pred_fallthru
          _
        %s216 = sand.u32 %s41, 1
        %s217 = scalar_lea.sflag [#allocation3], %s216
        %s218 = sand.u32 %s41, 1
        %s219 = smul.addr %s218, 4
        %s220 = scalar_lea.vmem [#allocation2], %s219
        %p221 = pneg %p54
        %p222 = pneg %p51
        %p223 = pneg %p80
        %p224 = pneg %p77
        %p225 = scmp.lt.s32.totalorder %s26, 0
        %s226 = scalar_select %p225, %s26, 0
        %s227 = scalar_lea.vmem %s2, %s226
        %p228 = pneg %p106
        %p229 = pneg %p103
        %p230 = pneg %p134
        %p231 = pneg %p131
        %s232 = sand.u32 %s121, 1
        %s233 = scalar_lea.sflag [#allocation4], %s232
        %s234 = sand.u32 %s121, 1
        %s235 = smul.addr %s234, 8
        %s236 = scalar_lea.vmem [#allocation7], %s235
        %p237 = scmp.lt.s32.totalorder %s26, 0
        %s238 = scalar_select %p237, %s26, 0
        %s239 = scalar_lea.vmem %s2, %s238
        %v241 = vld [vmem:[%s205] sm:$0xf]
        %v242 = vld [vmem:[#allocation5] sm:$0xf]
        %v243 = vld [vmem:[#allocation5 + $0x4] sm:$0xf]
        %v244 = vld [vmem:[#allocation5 + $0x8] sm:$0xf]
        %v245 = vld [vmem:[#allocation5 + $0xc] sm:$0xf]
        %v246 = vld [vmem:[%s239] sm:$0x1]
        %v248 = vperm.slane %v246, 0
        %v254 = vunpack.c.l.b16 %v242
        %v255 = vunpack.c.l.b16 %v243
        %v256 = vunpack.c.l.b16 %v244
        %v257 = vunpack.c.l.b16 %v245
        %v258 = vpack.c.b16 %v255, %v254
        %v259 = vpack.c.b16 %v257, %v256
        %vm262 = vcmask 261120
        %v264 = vsel %vm262, %v241, 0
        %266 = vmatpush.bf16.msra.mxu0 0
        %267 = vmatpush.bf16.msra.mxu0 0
        %268 = vmatpush.bf16.msra.mxu0 0
        %269 = vmatpush.bf16.msra.mxu0 0
        %270 = vmatpush.bf16.msra.mxu0 0
        %271 = vmatpush.bf16.msra.mxu0 0
        %272 = vmatpush.bf16.msra.mxu0 %v259
        %273 = vmatpush.bf16.msra.mxu0 %v258
        %274 = vmatmul.bf16.gmra.mxu0 %v264
        %v275 = vpop.f32.mrf.mxu0
        %v276 = vadd.f32 %v248, %v275
        %v277 = vpop.f32.mrf.mxu0
        %278 = vdwg.mxu0
        %279 = vst [vmem:[%s236] sm:$0xff] %v276
        %s280 = sand.u32 %s121, 1
        %s281 = scalar_lea.sflag [#allocation4], %s280
        %s282 = sand.u32 %s121, 1
        %s283 = smul.addr %s282, 8
        %s284 = scalar_lea.vmem [#allocation7], %s283
        // Predicated region
        $region41: #{tpu_custom_call.1} parent=31 // pred_check
          %p285 = pneg %p131
        $region42: #{tpu_custom_call.1} parent=31 // pred_check_branch
          %287 = sbr.rel (%p285) target = $region44
        $region43: #{tpu_custom_call.1} parent=31 // pred_region
          %289 = vsyncadd %s281, 0
          %s290 = sadd.s32 %s26, %s25
          %s291 = smul.addr %s290, 8
          %s292 = scalar_lea.hbm %s3, %s291
          %s294 = sshll.u32 %s284, 4
          %s295 = int_to_ptr.vmem [resolvable:$true] %s294
          %s296 = sshll.u32 %s292, 4
          %s297 = int_to_ptr.hbm [resolvable:$true] %s296
          %299 = dma.vmem_to_hbm [thread:$0]  %s295, 128, %s297, %s281
        $region44: #{tpu_custom_call.1} parent=31 // pred_fallthru
          _
      $region32: #{tpu_custom_call.1} parent=5 // pred_fallthru
        _
      %p300 = scmp.le.s32.totalorder 2, %s16
      // Predicated region
      $region45: #{tpu_custom_call.1} parent=5 // pred_check
        %p301 = pneg %p300
      $region46: #{tpu_custom_call.1} parent=5 // pred_check_branch
        %303 = sbr.rel (%p301) target = $region48
      $region47: #{tpu_custom_call.1} parent=5 // pred_region
        %s304 = ssub.s32 %s16, 2
        // Predicated region
        $region49: #{tpu_custom_call.1} parent=47 // pred_check
          %p305 = pneg %p137
        $region50: #{tpu_custom_call.1} parent=47 // pred_check_branch
          %307 = sbr.rel (%p305) target = $region52
        $region51: #{tpu_custom_call.1} parent=47 // pred_region
          %s308 = sand.u32 %s122, 1
          %s309 = scalar_lea.sflag [#allocation4], %s308
          %s310 = sand.u32 %s122, 1
          %s311 = smul.addr %s310, 8
          %s312 = scalar_lea.vmem [#allocation7], %s311
          %314 = dma.done %s309, 128
        $region52: #{tpu_custom_call.1} parent=47 // pred_fallthru
          _
      $region48: #{tpu_custom_call.1} parent=5 // pred_fallthru
        _
    $region6: #{tpu_custom_call.1} parent=1 // loop_footer
      %s20 = sadd.s32 1, %s16
    $region7: #{tpu_custom_call.1} parent=1 // loop_footer_branch
      %15 = sbr.rel target = $region3
    $region8: #{tpu_custom_call.1} parent=1 // loop_exit
      _
    %315 = vsyncpa [#allocation3], 1
    %s316 = scalar_lea.sflag [#allocation3], 1
    %317 = vsyncpa %s316, 1
    %318 = vsyncpa [#allocation6], 1
    %319 = vsyncpa [#allocation4], 1
    %s320 = scalar_lea.sflag [#allocation4], 1
    %321 = vsyncpa %s320, 1

// kernel: tpu_custom_call.1
$region0: #{tpu_custom_call.1}
  #allocation0 [shape = 'u32[]', space=smem, size = 0x4, offset = 0x4, fixed_abs, tag = 'smem constant byte address 0x4 - core index']
  #allocation1 [shape = 'u32[72,128]{1,0:T(1,128)}', space=vmem, size = 0x9000, scoped, tag = 'internal scratch']
  %s0 = inlined_call_operand.hbm [shape: bf16[16,32], index: 0, kind: input, shape index: {}]
  %s1 = inlined_call_operand.hbm [shape: bf16[32,128], index: 1, kind: input, shape index: {}]
  %s2 = inlined_call_operand.vmem [shape: f32[1,128], index: 2, kind: input, shape index: {}]
  %s3 = inlined_call_operand.hbm [shape: f32[16,128], index: 3, kind: output, shape index: {}]
  %s4 = sld [smem:[#allocation0]]
  $region53: #{tpu_custom_call.1} parent=0
    _
  %s6 = ssub.s32 1, %s4
  %s7 = scalar_select 0, %s6, %s4
  $region1: #{tpu_custom_call.1} parent=0
    #allocation2 [shape = 'u8[4096]{0}', space=vmem, size = 0x1000, scoped, tag = 'input window, operand 0']
    #allocation3 [shape = 's32[2]{0}', space=sflag, size = 0x8, scoped, tag = 'scoped memory for tpu_custom_call.1']
    #allocation4 [shape = 's32[2]{0}', space=sflag, size = 0x8, scoped, tag = 'scoped memory for tpu_custom_call.1']
    #allocation5 [shape = 'u8[8192]{0}', space=vmem, size = 0x2000, scoped, tag = 'input window, operand 1, single buffered']
    #allocation6 [shape = 's32[1]{0}', space=sflag, size = 0x4, scoped, tag = 'scoped memory for tpu_custom_call.1']
    #allocation7 [shape = 'u8[8192]{0}', space=vmem, size = 0x2000, scoped, tag = 'output window, operand 0']
    %8 = vsyncpa [#allocation3], 0
    %s9 = scalar_lea.sflag [#allocation3], 1
    %10 = vsyncpa %s9, 0
    %11 = vsyncpa [#allocation6], 0
    %12 = vsyncpa [#allocation4], 0
    %s13 = scalar_lea.sflag [#allocation4], 1
    %14 = vsyncpa %s13, 0
    loop: start=0, step=1, limit=4
    $region2: #{tpu_custom_call.1} parent=1 // loop_pre_header
      _
    $region3: #{tpu_custom_call.1} parent=1 // loop_header
      %s16 = sphi 0, %s20
      %p17 = scmp.ge.s32.totalorder %s16, 4
      %s23 = sphi 0, %s35
      %s24 = sphi 0, %s31
      %s25 = sphi 0, %s23
      %s26 = sphi 0, %s24
      %s27 = sphi 0, %s25
      %s28 = sphi 0, %s26
      %s38 = sphi 0, %s40
      %s41 = sphi 0, %s38
      %s42 = sphi 0, %s41
      %s58 = sphi 0, %s42
      %s64 = sphi 0, %s66
      %s67 = sphi 0, %s64
      %s68 = sphi 0, %s67
      %s84 = sphi 0, %s68
      %s90 = sphi 0, %s92
      %s93 = sphi 0, %s90
      %s94 = sphi 0, %s93
      %s110 = sphi 0, %s94
      %s118 = sphi 0, %s120
      %s121 = sphi 0, %s118
      %s122 = sphi 0, %s121
      %s138 = sphi 0, %s122
    $region4: #{tpu_custom_call.1} parent=1 // loop_header_branch
      %19 = sbr.rel (%p17) target = $region8
    $region5: #{tpu_custom_call.1} parent=1 // loop_body
      %s21 = ssub.s32 %s16, 1
      %s22 = ssub.s32 %s16, 2
      %s29 = sadd.s32 1, %s24
      %p30 = scmp.ge.s32.totalorder %s29, 1
      %s31 = scalar_select %p30, 0, %s29
      %s32 = sadd.s32 1, %s23
      %s33 = scalar_select %p30, %s32, %s23
      %p34 = scmp.ge.s32.totalorder %s33, 2
      %s35 = scalar_select %p34, 0, %s33
      %s36 = ssub.s32 %s23, %s35
      %p37 = scmp.eq.s32.totalorder %s36, 0
      %s39 = sadd.s32 %s38, 1
      %s40 = scalar_select %p37, %s38, %s39
      %p43 = pneg %p37
      %p44 = scmp.eq.s32.totalorder %s16, 1
      %p45 = por %p43, %p44
      %p46 = scmp.ne.s32.totalorder %s38, %s41
      %p47 = scmp.eq.s32.totalorder %s16, 0
      %p48 = por %p46, %p47
      %p49 = scmp.ne.s32.totalorder %s38, %s41
      %p50 = scmp.eq.s32.totalorder %s21, 1
      %p51 = por %p49, %p50
      %p52 = scmp.ne.s32.totalorder %s41, %s42
      %p53 = scmp.eq.s32.totalorder %s21, 0
      %p54 = por %p52, %p53
      %p55 = scmp.ne.s32.totalorder %s41, %s42
      %p56 = scmp.eq.s32.totalorder %s22, 1
      %p57 = por %p55, %p56
      %p59 = scmp.ne.s32.totalorder %s42, %s58
      %p60 = scmp.eq.s32.totalorder %s22, 0
      %p61 = por %p59, %p60
      %s62 = ssub.s32 %s24, %s31
      %p63 = scmp.eq.s32.totalorder %s62, 0
      %s65 = sadd.s32 %s64, 1
      %s66 = scalar_select %p63, %s64, %s65
      %p69 = pneg %p63
      %p70 = scmp.eq.s32.totalorder %s16, 1
      %p71 = por %p69, %p70
      %p72 = scmp.ne.s32.totalorder %s64, %s67
      %p73 = scmp.eq.s32.totalorder %s16, 0
      %p74 = por %p72, %p73
      %p75 = scmp.ne.s32.totalorder %s64, %s67
      %p76 = scmp.eq.s32.totalorder %s21, 1
      %p77 = por %p75, %p76
      %p78 = scmp.ne.s32.totalorder %s67, %s68
      %p79 = scmp.eq.s32.totalorder %s21, 0
      %p80 = por %p78, %p79
      %p81 = scmp.ne.s32.totalorder %s67, %s68
      %p82 = scmp.eq.s32.totalorder %s22, 1
      %p83 = por %p81, %p82
      %p85 = scmp.ne.s32.totalorder %s68, %s84
      %p86 = scmp.eq.s32.totalorder %s22, 0
      %p87 = por %p85, %p86
      %s88 = ssub.s32 %s24, %s31
      %p89 = scmp.eq.s32.totalorder %s88, 0
      %s91 = sadd.s32 %s90, 1
      %s92 = scalar_select %p89, %s90, %s91
      %p95 = pneg %p89
      %p96 = scmp.eq.s32.totalorder %s16, 1
      %p97 = por %p95, %p96
      %p98 = scmp.ne.s32.totalorder %s90, %s93
      %p99 = scmp.eq.s32.totalorder %s16, 0
      %p100 = por %p98, %p99
      %p101 = scmp.ne.s32.totalorder %s90, %s93
      %p102 = scmp.eq.s32.totalorder %s21, 1
      %p103 = por %p101, %p102
      %p104 = scmp.ne.s32.totalorder %s93, %s94
      %p105 = scmp.eq.s32.totalorder %s21, 0
      %p106 = por %p104, %p105
      %p107 = scmp.ne.s32.totalorder %s93, %s94
      %p108 = scmp.eq.s32.totalorder %s22, 1
      %p109 = por %p107, %p108
      %p111 = scmp.ne.s32.totalorder %s94, %s110
      %p112 = scmp.eq.s32.totalorder %s22, 0
      %p113 = por %p111, %p112
      %s114 = ssub.s32 %s23, %s35
      %s115 = ssub.s32 %s24, %s31
      %s116 = sor.u32 %s114, %s115
      %p117 = scmp.eq.s32.totalorder %s116, 0
      %s119 = sadd.s32 %s118, 1
      %s120 = scalar_select %p117, %s118, %s119
      %p123 = pneg %p117
      %p124 = scmp.eq.s32.totalorder %s16, 1
      %p125 = por %p123, %p124
      %p126 = scmp.ne.s32.totalorder %s118, %s121
      %p127 = scmp.eq.s32.totalorder %s16, 0
      %p128 = por %p126, %p127
      %p129 = scmp.ne.s32.totalorder %s118, %s121
      %p130 = scmp.eq.s32.totalorder %s21, 1
      %p131 = por %p129, %p130
      %p132 = scmp.ne.s32.totalorder %s121, %s122
      %p133 = scmp.eq.s32.totalorder %s21, 0
      %p134 = por %p132, %p133
      %p135 = scmp.ne.s32.totalorder %s121, %s122
      %p136 = scmp.eq.s32.totalorder %s22, 1
      %p137 = por %p135, %p136
      %p139 = scmp.ne.s32.totalorder %s122, %s138
      %p140 = scmp.eq.s32.totalorder %s22, 0
      %p141 = por %p139, %p140
      %p142 = scmp.le.s32.totalorder 1, %s16
      %p143 = scmp.lt.s32.totalorder %s16, 3
      %p144 = pnand %p142, %p143
      %p145 = pneg %p144
      // Predicated region
      $region9: #{tpu_custom_call.1} parent=5 // pred_check
        _
      $region10: #{tpu_custom_call.1} parent=5 // pred_check_branch
        %147 = sbr.rel (%p144) target = $region12
      $region11: #{tpu_custom_call.1} parent=5 // pred_region
        %s148 = ssub.s32 %s16, 1
        // Predicated region
        $region13: #{tpu_custom_call.1} parent=11 // pred_check
          %p149 = pneg %p80
        $region14: #{tpu_custom_call.1} parent=11 // pred_check_branch
          %151 = sbr.rel (%p149) target = $region16
        $region15: #{tpu_custom_call.1} parent=11 // pred_region
          %153 = vsyncadd [#allocation6], 0
          %s154 = smul.addr %s26, 4
          %s155 = scalar_lea.hbm %s1, %s154
          %s156 = sshll.u32 %s155, 4
          %s157 = int_to_ptr.hbm [resolvable:$true] %s156
          %s158 = sshll.u32 [#allocation5], 4
          %s159 = int_to_ptr.vmem [resolvable:$true] %s158
          %164 = dma.hbm_to_vmem [thread:$0]  %s157, 256, %s159, [#allocation6], 64, 64, 4
        $region16: #{tpu_custom_call.1} parent=11 // pred_fallthru
          _
        // Predicated region
        $region17: #{tpu_custom_call.1} parent=11 // pred_check
          %p165 = pneg %p106
        $region18: #{tpu_custom_call.1} parent=11 // pred_check_branch
          %167 = sbr.rel (%p165) target = $region20
        $region19: #{tpu_custom_call.1} parent=11 // pred_region
          %p168 = scmp.lt.s32.totalorder %s26, 0
          %s169 = scalar_select %p168, %s26, 0
          %s170 = scalar_lea.vmem %s2, %s169
        $region20: #{tpu_custom_call.1} parent=11 // pred_fallthru
          _
      $region12: #{tpu_custom_call.1} parent=5 // pred_fallthru
        _
      %p171 = scmp.lt.s32.totalorder %s16, 2
      // Predicated region
      $region21: #{tpu_custom_call.1} parent=5 // pred_check
        %p172 = pneg %p171
      $region22: #{tpu_custom_call.1} parent=5 // pred_check_branch
        %174 = sbr.rel (%p172) target = $region24
      $region23: #{tpu_custom_call.1} parent=5 // pred_region
        // Predicated region
        $region25: #{tpu_custom_call.1} parent=23 // pred_check
          %p175 = pneg %p48
        $region26: #{tpu_custom_call.1} parent=23 // pred_check_branch
          %177 = sbr.rel (%p175) target = $region28
        $region27: #{tpu_custom_call.1} parent=23 // pred_region
          %s178 = sand.u32 %s38, 1
          %s179 = scalar_lea.sflag [#allocation3], %s178
          %s180 = sand.u32 %s38, 1
          %s181 = smul.addr %s180, 4
          %s182 = scalar_lea.vmem [#allocation2], %s181
          %184 = vsyncadd %s179, 0
          %s185 = smul.addr %s23, 4
          %s186 = scalar_lea.hbm %s0, %s185
          %s188 = sshll.u32 %s186, 4
          %s189 = int_to_ptr.hbm [resolvable:$true] %s188
          %s190 = sshll.u32 %s182, 4
          %s191 = int_to_ptr.vmem [resolvable:$true] %s190
          %193 = dma.hbm_to_vmem [thread:$0]  %s189, 64, %s191, %s179
        $region28: #{tpu_custom_call.1} parent=23 // pred_fallthru
          _
      $region24: #{tpu_custom_call.1} parent=5 // pred_fallthru
        _
      %p194 = scmp.le.s32.totalorder 1, %s16
      %p195 = scmp.lt.s32.totalorder %s16, 3
      %p196 = pnand %p194, %p195
      %p197 = pneg %p196
      // Predicated region
      $region29: #{tpu_custom_call.1} parent=5 // pred_check
        _
      $region30: #{tpu_custom_call.1} parent=5 // pred_check_branch
        %199 = sbr.rel (%p196) target = $region32
      $region31: #{tpu_custom_call.1} parent=5 // pred_region
        %s200 = ssub.s32 %s16, 1
        %s201 = sand.u32 %s41, 1
        %s202 = scalar_lea.sflag [#allocation3], %s201
        %s203 = sand.u32 %s41, 1
        %s204 = smul.addr %s203, 4
        %s205 = scalar_lea.vmem [#allocation2], %s204
        // Predicated region
        $region33: #{tpu_custom_call.1} parent=31 // pred_check
          %p206 = pneg %p54
        $region34: #{tpu_custom_call.1} parent=31 // pred_check_branch
          %208 = sbr.rel (%p206) target = $region36
        $region35: #{tpu_custom_call.1} parent=31 // pred_region
          %210 = dma.done %s202, 64
        $region36: #{tpu_custom_call.1} parent=31 // pred_fallthru
          _
        // Predicated region
        $region37: #{tpu_custom_call.1} parent=31 // pred_check
          %p211 = pneg %p80
        $region38: #{tpu_custom_call.1} parent=31 // pred_check_branch
          %213 = sbr.rel (%p211) target = $region40
        $region39: #{tpu_custom_call.1} parent=31 // pred_region
          %215 = dma.done [#allocation6], 256
        $region40: #{tpu_custom_call.1} parent=31 // pred_fallthru
          _
        %s216 = sand.u32 %s41, 1
        %s217 = scalar_lea.sflag [#allocation3], %s216
        %s218 = sand.u32 %s41, 1
        %s219 = smul.addr %s218, 4
        %s220 = scalar_lea.vmem [#allocation2], %s219
        %p221 = pneg %p54
        %p222 = pneg %p51
        %p223 = pneg %p80
        %p224 = pneg %p77
        %p225 = scmp.lt.s32.totalorder %s26, 0
        %s226 = scalar_select %p225, %s26, 0
        %s227 = scalar_lea.vmem %s2, %s226
        %p228 = pneg %p106
        %p229 = pneg %p103
        %p230 = pneg %p134
        %p231 = pneg %p131
        %s232 = sand.u32 %s121, 1
        %s233 = scalar_lea.sflag [#allocation4], %s232
        %s234 = sand.u32 %s121, 1
        %s235 = smul.addr %s234, 8
        %s236 = scalar_lea.vmem [#allocation7], %s235
        %p237 = scmp.lt.s32.totalorder %s26, 0
        %s238 = scalar_select %p237, %s26, 0
        %s239 = scalar_lea.vmem %s2, %s238
        %v241 = vld [vmem:[%s205] sm:$0xf]
        %v242 = vld [vmem:[#allocation5] sm:$0xf]
        %v243 = vld [vmem:[#allocation5 + $0x4] sm:$0xf]
        %v244 = vld [vmem:[#allocation5 + $0x8] sm:$0xf]
        %v245 = vld [vmem:[#allocation5 + $0xc] sm:$0xf]
        %v246 = vld [vmem:[%s239] sm:$0x1]
        %v248 = vperm.slane %v246, 0
        %v254 = vunpack.c.l.b16 %v242
        %v255 = vunpack.c.l.b16 %v243
        %v256 = vunpack.c.l.b16 %v244
        %v257 = vunpack.c.l.b16 %v245
        %v258 = vpack.c.b16 %v255, %v254
        %v259 = vpack.c.b16 %v257, %v256
        %vm262 = vcmask 261120
        %v264 = vsel %vm262, %v241, 0
        %266 = vmatpush.bf16.msra.mxu0 0
        %267 = vmatpush.bf16.msra.mxu0 0
        %268 = vmatpush.bf16.msra.mxu0 0
        %269 = vmatpush.bf16.msra.mxu0 0
        %270 = vmatpush.bf16.msra.mxu0 0
        %271 = vmatpush.bf16.msra.mxu0 0
        %272 = vmatpush.bf16.msra.mxu0 %v259
        %273 = vmatpush.bf16.msra.mxu0 %v258
        %274 = vmatmul.bf16.gmra.mxu0 %v264
        %v275 = vpop.f32.mrf.mxu0
        %v276 = vadd.f32 %v248, %v275
        %v277 = vpop.f32.mrf.mxu0
        %278 = vdwg.mxu0
        %279 = vst [vmem:[%s236] sm:$0xff] %v276
        %s280 = sand.u32 %s121, 1
        %s281 = scalar_lea.sflag [#allocation4], %s280
        %s282 = sand.u32 %s121, 1
        %s283 = smul.addr %s282, 8
        %s284 = scalar_lea.vmem [#allocation7], %s283
        // Predicated region
        $region41: #{tpu_custom_call.1} parent=31 // pred_check
          %p285 = pneg %p131
        $region42: #{tpu_custom_call.1} parent=31 // pred_check_branch
          %287 = sbr.rel (%p285) target = $region44
        $region43: #{tpu_custom_call.1} parent=31 // pred_region
          %289 = vsyncadd %s281, 0
          %s290 = sadd.s32 %s26, %s25
          %s291 = smul.addr %s290, 8
          %s292 = scalar_lea.hbm %s3, %s291
          %s294 = sshll.u32 %s284, 4
          %s295 = int_to_ptr.vmem [resolvable:$true] %s294
          %s296 = sshll.u32 %s292, 4
          %s297 = int_to_ptr.hbm [resolvable:$true] %s296
          %299 = dma.vmem_to_hbm [thread:$0]  %s295, 128, %s297, %s281
        $region44: #{tpu_custom_call.1} parent=31 // pred_fallthru
          _
      $region32: #{tpu_custom_call.1} parent=5 // pred_fallthru
        _
      %p300 = scmp.le.s32.totalorder 2, %s16
      // Predicated region
      $region45: #{tpu_custom_call.1} parent=5 // pred_check
        %p301 = pneg %p300
      $region46: #{tpu_custom_call.1} parent=5 // pred_check_branch
        %303 = sbr.rel (%p301) target = $region48
      $region47: #{tpu_custom_call.1} parent=5 // pred_region
        %s304 = ssub.s32 %s16, 2
        // Predicated region
        $region49: #{tpu_custom_call.1} parent=47 // pred_check
          %p305 = pneg %p137
        $region50: #{tpu_custom_call.1} parent=47 // pred_check_branch
          %307 = sbr.rel (%p305) target = $region52
        $region51: #{tpu_custom_call.1} parent=47 // pred_region
          %s308 = sand.u32 %s122, 1
          %s309 = scalar_lea.sflag [#allocation4], %s308
          %s310 = sand.u32 %s122, 1
          %s311 = smul.addr %s310, 8
          %s312 = scalar_lea.vmem [#allocation7], %s311
          %314 = dma.done %s309, 128
        $region52: #{tpu_custom_call.1} parent=47 // pred_fallthru
          _
      $region48: #{tpu_custom_call.1} parent=5 // pred_fallthru
        _
    $region6: #{tpu_custom_call.1} parent=1 // loop_footer
      %s20 = sadd.s32 1, %s16
    $region7: #{tpu_custom_call.1} parent=1 // loop_footer_branch
      %15 = sbr.rel target = $region3
    $region8: #{tpu_custom_call.1} parent=1 // loop_exit
      _
    %315 = vsyncpa [#allocation3], 1
    %s316 = scalar_lea.sflag [#allocation3], 1
    %317 = vsyncpa %s316, 1
    %318 = vsyncpa [#allocation6], 1
    %319 = vsyncpa [#allocation4], 1
    %s320 = scalar_lea.sflag [#allocation4], 1
    %321 = vsyncpa %s320, 1

</llo_original>
